<compile_context>
chip_gen: v7x
topology: tpu7x:2x2x1
jax: 0.10.0
libtpu: 0.0.40
codegen_flags: <defaults>
</compile_context>

<pallas_src>
import math

import jax
import jax.numpy as jnp
from jax import lax
from jax.experimental import pallas as pl
from jax.experimental.pallas import tpu as pltpu

H_BERT = 768      # BERT hidden size (fixed by nn.Linear(768, 256))
H1 = 256          # first hidden layer
H2 = 16           # second hidden layer (real width)
NCLS = 2          # number of classes (real width)
H2_PAD = 128      # lane-padded second hidden layer
NCLS_PAD = 128    # lane-padded logits (lane-dense output stores)
TB_MAX = 256      # batch tile: fills the 256-row MXU; >=2 grid steps for
                  # B>=512 keeps both v7x TensorCores busy.


def _round_up(x, m):
    return ((x + m - 1) // m) * m


def _gelu_exact(x):
    # PyTorch nn.GELU() default: exact erf formulation.
    return 0.5 * x * (1.0 + lax.erf(x * (1.0 / math.sqrt(2.0))))


def _head_kernel(x_ref, w1_ref, b1_ref, w2_ref, b2_ref, w3_ref, b3_ref, o_ref):
    # x_ref: (TB, 768) f32 CLS vectors, selected directly by the BlockSpec from
    # the (B, S*768) reshape of hidden_states (no wrapper-side slice/copy).
    x = x_ref[...].astype(jnp.bfloat16)

    # Layer 1: 768 -> 256 (bf16 MXU, f32 accumulation). >98% of the FLOPs.
    h = jnp.dot(x, w1_ref[...], preferred_element_type=jnp.float32) + b1_ref[...]
    h = _gelu_exact(h)                                        # (TB, 256) f32
    # TODO(synk): nn.Dropout(0.2)/nn.Dropout(0.5) are identity in eval mode;
    # train-mode stochastic masking is not implemented here.

    # Layer 2: 256 -> 16, lane-padded to 128 (pad columns have zero W/bias).
    h = jnp.dot(h.astype(jnp.bfloat16), w2_ref[...],
                preferred_element_type=jnp.float32) + b2_ref[...]
    h = _gelu_exact(h)                                        # GELU(0) == 0 on pad lanes

    # Layer 3: 16 -> 2, lane-padded to 128 so the store is a dense 128-lane vst.
    o = jnp.dot(h, w3_ref[...], preferred_element_type=jnp.float32) + b3_ref[...]
    o_ref[...] = o.astype(o_ref.dtype)                        # (TB, 128)


def bert_classification_head(hidden_states, params):
    """hidden_states: (B, S, 768) float32 -> logits (B, 2) float32."""
    b, s, h = hidden_states.shape
    assert h == H_BERT

    # Free reshape: row i of x2d = [pos0 hidden | pos1 hidden | ...], so the
    # CLS vector is columns [0:768]; the input BlockSpec selects that window.
    x2d = hidden_states.reshape(b, s * h)

    # Sublane-align the batch (no-op when b % 8 == 0).
    b_pad = _round_up(b, 8)
    if b_pad != b:
        x2d = jnp.pad(x2d, ((0, b_pad - b), (0, 0)))

    tb = min(TB_MAX, b_pad)
    grid = (pl.cdiv(b_pad, tb),)   # Pallas clamps a ragged final batch block.

    # bf16 weights for the MXU (f32 accumulation); biases and W3 stay f32.
    w1 = params["w1"].astype(jnp.bfloat16)                                       # (768, 256)
    b1 = params["b1"].reshape(1, H1).astype(jnp.float32)                         # (1, 256)
    w2 = jnp.pad(params["w2"], ((0, 0), (0, H2_PAD - H2))).astype(jnp.bfloat16)  # (256, 128)
    b2 = jnp.pad(params["b2"], (0, H2_PAD - H2)).reshape(1, H2_PAD).astype(jnp.float32)
    w3 = jnp.pad(params["w3"], ((0, H2_PAD - H2), (0, NCLS_PAD - NCLS))).astype(jnp.float32)
    b3 = jnp.pad(params["b3"], (0, NCLS_PAD - NCLS)).reshape(1, NCLS_PAD).astype(jnp.float32)

    flops = 2 * b_pad * (H_BERT * H1 + H1 * H2_PAD + H2_PAD * NCLS_PAD)
    bytes_accessed = (b_pad * H_BERT * 4                       # CLS activations in
                      + (H_BERT * H1 + H1 * H2_PAD) * 2        # bf16 weights
                      + (H2_PAD * NCLS_PAD + H1 + H2_PAD + NCLS_PAD) * 4
                      + b_pad * NCLS_PAD * 4)                  # logits out

    out = pl.pallas_call(
        _head_kernel,
        out_shape=jax.ShapeDtypeStruct((b_pad, NCLS_PAD), jnp.float32),
        grid_spec=pltpu.PrefetchScalarGridSpec(
            num_scalar_prefetch=0,
            grid=grid,
            in_specs=[
                pl.BlockSpec((tb, H_BERT), lambda i: (i, 0)),        # CLS tile (cols 0:768)
                pl.BlockSpec((H_BERT, H1), lambda i: (0, 0)),        # W1 (bf16)
                pl.BlockSpec((1, H1), lambda i: (0, 0)),             # b1
                pl.BlockSpec((H1, H2_PAD), lambda i: (0, 0)),        # W2 (bf16, padded)
                pl.BlockSpec((1, H2_PAD), lambda i: (0, 0)),         # b2
                pl.BlockSpec((H2_PAD, NCLS_PAD), lambda i: (0, 0)),  # W3 (padded)
                pl.BlockSpec((1, NCLS_PAD), lambda i: (0, 0)),       # b3
            ],
            out_specs=pl.BlockSpec((tb, NCLS_PAD), lambda i: (i, 0)),
        ),
        compiler_params=pltpu.CompilerParams(
            dimension_semantics=("parallel",),   # batch axis: megacore-shardable on v7x
        ),
        cost_estimate=pl.CostEstimate(
            flops=flops,
            transcendentals=b_pad * (H1 + H2_PAD),
            bytes_accessed=bytes_accessed,
        ),
    )(x2d, w1, b1, w2, b2, w3, b3)
    return out[:b, :NCLS]


def init_params(key):
    """Deterministic init mimicking nn.Linear's U(-1/sqrt(fan_in), +1/sqrt(fan_in))."""
    ks = jax.random.split(key, 6)

    def lin(kw, kb, fan_in, fan_out):
        bound = 1.0 / math.sqrt(fan_in)
        w = jax.random.uniform(kw, (fan_in, fan_out), jnp.float32, -bound, bound)
        b = jax.random.uniform(kb, (fan_out,), jnp.float32, -bound, bound)
        return w, b

    w1, b1 = lin(ks[0], ks[1], H_BERT, H1)
    w2, b2 = lin(ks[2], ks[3], H1, H2)
    w3, b3 = lin(ks[4], ks[5], H2, NCLS)
    return {"w1": w1, "b1": b1, "w2": w2, "b2": b2, "w3": w3, "b3": b3}


def _reference_f32(hidden_states, p):
    x = hidden_states[:, 0, :]
    h = _gelu_exact(x @ p["w1"] + p["b1"])
    h = _gelu_exact(h @ p["w2"] + p["b2"])
    return h @ p["w3"] + p["b3"]


def _reference_mixed(hidden_states, p):
    # Mirrors the kernel's mixed precision: bf16 operands, f32 accumulation.
    x = hidden_states[:, 0, :].astype(jnp.bfloat16)
    h = jnp.dot(x, p["w1"].astype(jnp.bfloat16),
                preferred_element_type=jnp.float32) + p["b1"]
    h = _gelu_exact(h)
    h = jnp.dot(h.astype(jnp.bfloat16), p["w2"].astype(jnp.bfloat16),
                preferred_element_type=jnp.float32) + p["b2"]
    h = _gelu_exact(h)
    return jnp.dot(h, p["w3"], preferred_element_type=jnp.float32) + p["b3"]


if __name__ == "__main__":
    key = jax.random.PRNGKey(0)
    k_hid, k_par = jax.random.split(key)

    B, S = 2, 8  # small stand-ins (the real module pads sequences to max_length=148)
    # Synthetic stand-in for bert(input_ids, attention_mask).last_hidden_state,
    # since the tokenizer + pretrained checkpoint cannot be reproduced in-script.
    hidden_states = jax.random.normal(k_hid, (B, S, H_BERT), jnp.float32)
    params = init_params(k_par)

    logits = bert_classification_head(hidden_states, params)
    logits = jax.block_until_ready(logits)

    assert logits.shape == (B, NCLS)
    ref_mixed = _reference_mixed(hidden_states, params)
    ref_f32 = _reference_f32(hidden_states, params)
    assert jnp.allclose(logits, ref_mixed, atol=2e-3, rtol=2e-3), \
        "mismatch vs mixed-precision reference"
    assert jnp.allclose(logits, ref_f32, atol=5e-2, rtol=5e-2), \
        "mismatch vs f32 reference"

    print("KERNEL_OK")
</pallas_src>

<mosaic_0001>
module attributes {stable_mosaic.version = 11 : i64} {
  func.func @_head_kernel(%arg0: i32, %arg1: memref<8x768xf32, #tpu.memory_space<vmem>>, %arg2: memref<768x256xbf16, #tpu.memory_space<vmem>>, %arg3: memref<1x256xf32, #tpu.memory_space<vmem>>, %arg4: memref<256x128xbf16, #tpu.memory_space<vmem>>, %arg5: memref<1x128xf32, #tpu.memory_space<vmem>>, %arg6: memref<128x128xf32, #tpu.memory_space<vmem>>, %arg7: memref<1x128xf32, #tpu.memory_space<vmem>>, %arg8: memref<8x128xf32, #tpu.memory_space<vmem>>) attributes {dimension_semantics = [#tpu.dimension_semantics<parallel>], iteration_bounds = array<i64: 1>, scalar_prefetch = 0 : i64, scratch_operands = 0 : i64, tpu.core_type = #tpu.core_type<tc>, window_params = [{transform_indices = @transform_0, window_bounds = array<i64: 8, 768>}, {pipeline_mode = #tpu.pipeline_mode<synchronous>, transform_indices = @transform_1, window_bounds = array<i64: 768, 256>}, {pipeline_mode = #tpu.pipeline_mode<synchronous>, transform_indices = @transform_2, window_bounds = array<i64: 1, 256>}, {pipeline_mode = #tpu.pipeline_mode<synchronous>, transform_indices = @transform_3, window_bounds = array<i64: 256, 128>}, {pipeline_mode = #tpu.pipeline_mode<synchronous>, transform_indices = @transform_4, window_bounds = array<i64: 1, 128>}, {pipeline_mode = #tpu.pipeline_mode<synchronous>, transform_indices = @transform_5, window_bounds = array<i64: 128, 128>}, {pipeline_mode = #tpu.pipeline_mode<synchronous>, transform_indices = @transform_6, window_bounds = array<i64: 1, 128>}, {transform_indices = @transform_7, window_bounds = array<i64: 8, 128>}]} {
    %c0 = arith.constant 0 : index
    %c0_0 = arith.constant 0 : index
    %0 = vector.load %arg1[%c0, %c0_0] : memref<8x768xf32, #tpu.memory_space<vmem>>, vector<8x768xf32>
    %1 = arith.truncf %0 : vector<8x768xf32> to vector<8x768xbf16>
    %c0_1 = arith.constant 0 : index
    %c0_2 = arith.constant 0 : index
    %2 = vector.load %arg2[%c0_1, %c0_2] : memref<768x256xbf16, #tpu.memory_space<vmem>>, vector<768x256xbf16>
    %cst = arith.constant dense<0.000000e+00> : vector<8x256xf32>
    %3 = tpu.matmul %1, %2, %cst {dimension_numbers = #tpu.dot_dimension_numbers<[1], [0], [0], [1], [0, 0, 1, 1], [], []>} : vector<8x768xbf16>, vector<768x256xbf16>, vector<8x256xf32> -> vector<8x256xf32>
    %c0_3 = arith.constant 0 : index
    %c0_4 = arith.constant 0 : index
    %4 = vector.load %arg3[%c0_3, %c0_4] : memref<1x256xf32, #tpu.memory_space<vmem>>, vector<1x256xf32>
    %5 = vector.broadcast %4 : vector<1x256xf32> to vector<8x256xf32>
    %6 = arith.addf %3, %5 : vector<8x256xf32>
    %cst_5 = arith.constant 5.000000e-01 : f32
    %7 = vector.broadcast %cst_5 : f32 to vector<8x256xf32>
    %8 = arith.mulf %7, %6 : vector<8x256xf32>
    %cst_6 = arith.constant 0.707106769 : f32
    %9 = vector.broadcast %cst_6 : f32 to vector<8x256xf32>
    %10 = arith.mulf %6, %9 : vector<8x256xf32>
    %11 = math.erf %10 : vector<8x256xf32>
    %cst_7 = arith.constant 1.000000e+00 : f32
    %12 = vector.broadcast %cst_7 : f32 to vector<8x256xf32>
    %13 = arith.addf %12, %11 : vector<8x256xf32>
    %14 = arith.mulf %8, %13 : vector<8x256xf32>
    %15 = arith.truncf %14 : vector<8x256xf32> to vector<8x256xbf16>
    %c0_8 = arith.constant 0 : index
    %c0_9 = arith.constant 0 : index
    %16 = vector.load %arg4[%c0_8, %c0_9] : memref<256x128xbf16, #tpu.memory_space<vmem>>, vector<256x128xbf16>
    %cst_10 = arith.constant dense<0.000000e+00> : vector<8x128xf32>
    %17 = tpu.matmul %15, %16, %cst_10 {dimension_numbers = #tpu.dot_dimension_numbers<[1], [0], [0], [1], [0, 0, 1, 1], [], []>} : vector<8x256xbf16>, vector<256x128xbf16>, vector<8x128xf32> -> vector<8x128xf32>
    %c0_11 = arith.constant 0 : index
    %c0_12 = arith.constant 0 : index
    %18 = vector.load %arg5[%c0_11, %c0_12] : memref<1x128xf32, #tpu.memory_space<vmem>>, vector<1x128xf32>
    %19 = vector.broadcast %18 : vector<1x128xf32> to vector<8x128xf32>
    %20 = arith.addf %17, %19 : vector<8x128xf32>
    %cst_13 = arith.constant 5.000000e-01 : f32
    %21 = vector.broadcast %cst_13 : f32 to vector<8x128xf32>
    %22 = arith.mulf %21, %20 : vector<8x128xf32>
    %cst_14 = arith.constant 0.707106769 : f32
    %23 = vector.broadcast %cst_14 : f32 to vector<8x128xf32>
    %24 = arith.mulf %20, %23 : vector<8x128xf32>
    %25 = math.erf %24 : vector<8x128xf32>
    %cst_15 = arith.constant 1.000000e+00 : f32
    %26 = vector.broadcast %cst_15 : f32 to vector<8x128xf32>
    %27 = arith.addf %26, %25 : vector<8x128xf32>
    %28 = arith.mulf %22, %27 : vector<8x128xf32>
    %c0_16 = arith.constant 0 : index
    %c0_17 = arith.constant 0 : index
    %29 = vector.load %arg6[%c0_16, %c0_17] : memref<128x128xf32, #tpu.memory_space<vmem>>, vector<128x128xf32>
    %cst_18 = arith.constant dense<0.000000e+00> : vector<8x128xf32>
    %30 = tpu.matmul %28, %29, %cst_18 {dimension_numbers = #tpu.dot_dimension_numbers<[1], [0], [0], [1], [0, 0, 1, 1], [], []>} : vector<8x128xf32>, vector<128x128xf32>, vector<8x128xf32> -> vector<8x128xf32>
    %c0_19 = arith.constant 0 : index
    %c0_20 = arith.constant 0 : index
    %31 = vector.load %arg7[%c0_19, %c0_20] : memref<1x128xf32, #tpu.memory_space<vmem>>, vector<1x128xf32>
    %32 = vector.broadcast %31 : vector<1x128xf32> to vector<8x128xf32>
    %33 = arith.addf %30, %32 : vector<8x128xf32>
    %c0_21 = arith.constant 0 : index
    %c0_22 = arith.constant 0 : index
    %34 = vector.load %arg8[%c0_21, %c0_22] : memref<8x128xf32, #tpu.memory_space<vmem>>, vector<8x128xf32>
    tpu.vector_store %arg8[%c0_21, %c0_22], %33 {strides = array<i32>} : memref<8x128xf32, #tpu.memory_space<vmem>>, vector<8x128xf32>,
    return
  }
  func.func @transform_0(%arg0: i32) -> (i32, i32) {
    %c0_i32 = arith.constant 0 : i32
    %c0_i32_0 = arith.constant 0 : i32
    return %arg0, %c0_i32 : i32, i32
  }
  func.func @transform_1(%arg0: i32) -> (i32, i32) {
    %c0_i32 = arith.constant 0 : i32
    %c0_i32_0 = arith.constant 0 : i32
    %c0_i32_1 = arith.constant 0 : i32
    return %c0_i32, %c0_i32_0 : i32, i32
  }
  func.func @transform_2(%arg0: i32) -> (i32, i32) {
    %c0_i32 = arith.constant 0 : i32
    %c0_i32_0 = arith.constant 0 : i32
    %c0_i32_1 = arith.constant 0 : i32
    return %c0_i32, %c0_i32_0 : i32, i32
  }
  func.func @transform_3(%arg0: i32) -> (i32, i32) {
    %c0_i32 = arith.constant 0 : i32
    %c0_i32_0 = arith.constant 0 : i32
    %c0_i32_1 = arith.constant 0 : i32
    return %c0_i32, %c0_i32_0 : i32, i32
  }
  func.func @transform_4(%arg0: i32) -> (i32, i32) {
    %c0_i32 = arith.constant 0 : i32
    %c0_i32_0 = arith.constant 0 : i32
    %c0_i32_1 = arith.constant 0 : i32
    return %c0_i32, %c0_i32_0 : i32, i32
  }
  func.func @transform_5(%arg0: i32) -> (i32, i32) {
    %c0_i32 = arith.constant 0 : i32
    %c0_i32_0 = arith.constant 0 : i32
    %c0_i32_1 = arith.constant 0 : i32
    return %c0_i32, %c0_i32_0 : i32, i32
  }
  func.func @transform_6(%arg0: i32) -> (i32, i32) {
    %c0_i32 = arith.constant 0 : i32
    %c0_i32_0 = arith.constant 0 : i32
    %c0_i32_1 = arith.constant 0 : i32
    return %c0_i32, %c0_i32_0 : i32, i32
  }
  func.func @transform_7(%arg0: i32) -> (i32, i32) {
    %c0_i32 = arith.constant 0 : i32
    %c0_i32_0 = arith.constant 0 : i32
    return %arg0, %c0_i32 : i32, i32
  }
}

</mosaic_0001>

<llo_original>
// kernel: tpu_custom_call.1
$region0: #{tpu_custom_call.1}
  #allocation0 [shape = 'u32[]', space=smem, size = 0x4, offset = 0x4, fixed_abs, tag = 'smem constant byte address 0x4 - core index']
  #allocation1 [shape = 'u32[144,128]{1,0:T(1,128)}', space=vmem, size = 0x12000, scoped, tag = 'internal scratch']
  %s0 = inlined_call_operand.hbm [shape: f32[8,6144], index: 0, kind: input, shape index: {}]
  %s1 = inlined_call_operand.hbm [shape: bf16[768,256], index: 1, kind: input, shape index: {}]
  %s2 = inlined_call_operand.vmem [shape: f32[1,256], index: 2, kind: input, shape index: {}]
  %s3 = inlined_call_operand.hbm [shape: bf16[256,128], index: 3, kind: input, shape index: {}]
  %s4 = inlined_call_operand.vmem [shape: f32[1,128], index: 4, kind: input, shape index: {}]
  %s5 = inlined_call_operand.hbm [shape: f32[128,128], index: 5, kind: input, shape index: {}]
  %s6 = inlined_call_operand.vmem [shape: f32[1,128], index: 6, kind: input, shape index: {}]
  %s7 = inlined_call_operand.hbm [shape: f32[8,128], index: 7, kind: output, shape index: {}]
  %s8 = sld [smem:[#allocation0]]
  $region54: #{tpu_custom_call.1} parent=0
    _
  %s10 = ssub.s32 1, %s8
  %s11 = scalar_select 0, %s10, %s8
  $region1: #{tpu_custom_call.1} parent=0
    #allocation2 [shape = 'u8[24576]{0}', space=vmem, size = 0x6000, scoped, tag = 'input window, operand 0, single buffered']
    #allocation3 [shape = 's32[1]{0}', space=sflag, size = 0x4, scoped, tag = 'scoped memory for tpu_custom_call.1']
    #allocation4 [shape = 's32[1]{0}', space=sflag, size = 0x4, scoped, tag = 'scoped memory for tpu_custom_call.1']
    #allocation5 [shape = 'u8[393216]{0}', space=vmem, size = 0x60000, scoped, tag = 'input window, operand 1, single buffered']
    #allocation6 [shape = 's32[1]{0}', space=sflag, size = 0x4, scoped, tag = 'scoped memory for tpu_custom_call.1']
    #allocation7 [shape = 'u8[65536]{0}', space=vmem, size = 0x10000, scoped, tag = 'input window, operand 3, single buffered']
    #allocation8 [shape = 'u8[65536]{0}', space=vmem, size = 0x10000, scoped, tag = 'input window, operand 5, single buffered']
    #allocation9 [shape = 's32[1]{0}', space=sflag, size = 0x4, scoped, tag = 'scoped memory for tpu_custom_call.1']
    #allocation10 [shape = 'u8[4096]{0}', space=vmem, size = 0x1000, scoped, tag = 'output window, operand 0, single buffered']
    %12 = vsyncpa [#allocation3], 0
    %13 = vsyncpa [#allocation6], 0
    %14 = vsyncpa [#allocation9], 0
    %15 = vsyncpa [#allocation4], 0
    // Predicated region
    $region2: #{tpu_custom_call.1} parent=1 // pred_check
      _
    $region3: #{tpu_custom_call.1} parent=1 // pred_check_branch
      %17 = sbr.rel (0) target = $region5
    $region4: #{tpu_custom_call.1} parent=1 // pred_region
      %s19 = ssub.s32 768, 768
      %20 = vsyncadd [#allocation3], %s19
      %s22 = sshll.u32 [#allocation2], 4
      %s23 = int_to_ptr.vmem [resolvable:$true] %s22
      %25 = dma.hbm_to_vmem [thread:$0]  %s0, 768, %s23, [#allocation3]
    $region5: #{tpu_custom_call.1} parent=1 // pred_fallthru
      _
    // Predicated region
    $region6: #{tpu_custom_call.1} parent=1 // pred_check
      _
    $region7: #{tpu_custom_call.1} parent=1 // pred_check_branch
      %27 = sbr.rel (0) target = $region9
    $region8: #{tpu_custom_call.1} parent=1 // pred_region
      %s29 = ssub.s32 12288, 12288
      %30 = vsyncadd [#allocation6], %s29
      %s31 = sshll.u32 [#allocation5], 4
      %s32 = int_to_ptr.vmem [resolvable:$true] %s31
      %37 = dma.hbm_to_vmem [thread:$0]  %s1, 12288, %s32, [#allocation6], 128, 128, 8
    $region9: #{tpu_custom_call.1} parent=1 // pred_fallthru
      _
    // Predicated region
    $region10: #{tpu_custom_call.1} parent=1 // pred_check
      _
    $region11: #{tpu_custom_call.1} parent=1 // pred_check_branch
      %39 = sbr.rel (0) target = $region13
    $region12: #{tpu_custom_call.1} parent=1 // pred_region
      _
    $region13: #{tpu_custom_call.1} parent=1 // pred_fallthru
      _
    // Predicated region
    $region14: #{tpu_custom_call.1} parent=1 // pred_check
      _
    $region15: #{tpu_custom_call.1} parent=1 // pred_check_branch
      %41 = sbr.rel (0) target = $region17
    $region16: #{tpu_custom_call.1} parent=1 // pred_region
      %s43 = ssub.s32 2048, 2048
      %44 = vsyncadd [#allocation6], %s43
      %s45 = sshll.u32 [#allocation7], 4
      %s46 = int_to_ptr.vmem [resolvable:$true] %s45
      %51 = dma.hbm_to_vmem [thread:$0]  %s3, 2048, %s46, [#allocation6], 64, 64, 4
    $region17: #{tpu_custom_call.1} parent=1 // pred_fallthru
      _
    // Predicated region
    $region18: #{tpu_custom_call.1} parent=1 // pred_check
      _
    $region19: #{tpu_custom_call.1} parent=1 // pred_check_branch
      %53 = sbr.rel (0) target = $region21
    $region20: #{tpu_custom_call.1} parent=1 // pred_region
      _
    $region21: #{tpu_custom_call.1} parent=1 // pred_fallthru
      _
    // Predicated region
    $region22: #{tpu_custom_call.1} parent=1 // pred_check
      _
    $region23: #{tpu_custom_call.1} parent=1 // pred_check_branch
      %55 = sbr.rel (0) target = $region25
    $region24: #{tpu_custom_call.1} parent=1 // pred_region
      %s57 = ssub.s32 2048, 2048
      %58 = vsyncadd [#allocation9], %s57
      %s59 = sshll.u32 [#allocation8], 4
      %s60 = int_to_ptr.vmem [resolvable:$true] %s59
      %65 = dma.hbm_to_vmem [thread:$0]  %s5, 2048, %s60, [#allocation9], 128, 128, 8
    $region25: #{tpu_custom_call.1} parent=1 // pred_fallthru
      _
    // Predicated region
    $region26: #{tpu_custom_call.1} parent=1 // pred_check
      _
    $region27: #{tpu_custom_call.1} parent=1 // pred_check_branch
      %67 = sbr.rel (0) target = $region29
    $region28: #{tpu_custom_call.1} parent=1 // pred_region
      _
    $region29: #{tpu_custom_call.1} parent=1 // pred_fallthru
      _
    // Predicated region
    $region30: #{tpu_custom_call.1} parent=1 // pred_check
      _
    $region31: #{tpu_custom_call.1} parent=1 // pred_check_branch
      %69 = sbr.rel (0) target = $region33
    $region32: #{tpu_custom_call.1} parent=1 // pred_region
      %70 = dma.done [#allocation3], 768
    $region33: #{tpu_custom_call.1} parent=1 // pred_fallthru
      _
    // Predicated region
    $region34: #{tpu_custom_call.1} parent=1 // pred_check
      _
    $region35: #{tpu_custom_call.1} parent=1 // pred_check_branch
      %72 = sbr.rel (0) target = $region37
    $region36: #{tpu_custom_call.1} parent=1 // pred_region
      %73 = dma.done [#allocation6], 12288
    $region37: #{tpu_custom_call.1} parent=1 // pred_fallthru
      _
    // Predicated region
    $region38: #{tpu_custom_call.1} parent=1 // pred_check
      _
    $region39: #{tpu_custom_call.1} parent=1 // pred_check_branch
      %75 = sbr.rel (0) target = $region41
    $region40: #{tpu_custom_call.1} parent=1 // pred_region
      %76 = dma.done [#allocation6], 2048
    $region41: #{tpu_custom_call.1} parent=1 // pred_fallthru
      _
    // Predicated region
    $region42: #{tpu_custom_call.1} parent=1 // pred_check
      _
    $region43: #{tpu_custom_call.1} parent=1 // pred_check_branch
      %78 = sbr.rel (0) target = $region45
    $region44: #{tpu_custom_call.1} parent=1 // pred_region
      %79 = dma.done [#allocation9], 2048
    $region45: #{tpu_custom_call.1} parent=1 // pred_fallthru
      _
    %v81 = vld [vmem:[#allocation2] sm:$0xff]
    %v82 = vld [vmem:[#allocation2 + $0x8] sm:$0xff]
    %v83 = vld [vmem:[#allocation2 + $0x10] sm:$0xff]
    %v84 = vld [vmem:[#allocation2 + $0x18] sm:$0xff]
    %v85 = vld [vmem:[#allocation2 + $0x20] sm:$0xff]
    %v86 = vld [vmem:[#allocation2 + $0x28] sm:$0xff]
    %v87 = vpack.c.bf16 %v81, %v81
    %v88 = vpack.c.bf16 %v82, %v82
    %v89 = vpack.c.bf16 %v83, %v83
    %v90 = vpack.c.bf16 %v84, %v84
    %v91 = vpack.c.bf16 %v85, %v85
    %v92 = vpack.c.bf16 %v86, %v86
    %v93 = vld [vmem:[#allocation5] sm:$0xff]
    %v94 = vld [vmem:[#allocation5 + $0x8] sm:$0xff]
    %v95 = vld [vmem:[#allocation5 + $0x10] sm:$0xff]
    %v96 = vld [vmem:[#allocation5 + $0x18] sm:$0xff]
    %v97 = vld [vmem:[#allocation5 + $0x20] sm:$0xff]
    %v98 = vld [vmem:[#allocation5 + $0x28] sm:$0xff]
    %v99 = vld [vmem:[#allocation5 + $0x30] sm:$0xff]
    %v100 = vld [vmem:[#allocation5 + $0x38] sm:$0xff]
    %v101 = vld [vmem:[#allocation5 + $0x40] sm:$0xff]
    %v102 = vld [vmem:[#allocation5 + $0x48] sm:$0xff]
    %v103 = vld [vmem:[#allocation5 + $0x50] sm:$0xff]
    %v104 = vld [vmem:[#allocation5 + $0x58] sm:$0xff]
    %v105 = vld [vmem:[#allocation5 + $0x60] sm:$0xff]
    %v106 = vld [vmem:[#allocation5 + $0x68] sm:$0xff]
    %v107 = vld [vmem:[#allocation5 + $0x70] sm:$0xff]
    %v108 = vld [vmem:[#allocation5 + $0x78] sm:$0xff]
    %v109 = vld [vmem:[#allocation5 + $0x80] sm:$0xff]
    %v110 = vld [vmem:[#allocation5 + $0x88] sm:$0xff]
    %v111 = vld [vmem:[#allocation5 + $0x90] sm:$0xff]
    %v112 = vld [vmem:[#allocation5 + $0x98] sm:$0xff]
    %v113 = vld [vmem:[#allocation5 + $0xa0] sm:$0xff]
    %v114 = vld [vmem:[#allocation5 + $0xa8] sm:$0xff]
    %v115 = vld [vmem:[#allocation5 + $0xb0] sm:$0xff]
    %v116 = vld [vmem:[#allocation5 + $0xb8] sm:$0xff]
    %v117 = vld [vmem:[#allocation5 + $0xc0] sm:$0xff]
    %v118 = vld [vmem:[#allocation5 + $0xc8] sm:$0xff]
    %v119 = vld [vmem:[#allocation5 + $0xd0] sm:$0xff]
    %v120 = vld [vmem:[#allocation5 + $0xd8] sm:$0xff]
    %v121 = vld [vmem:[#allocation5 + $0xe0] sm:$0xff]
    %v122 = vld [vmem:[#allocation5 + $0xe8] sm:$0xff]
    %v123 = vld [vmem:[#allocation5 + $0xf0] sm:$0xff]
    %v124 = vld [vmem:[#allocation5 + $0xf8] sm:$0xff]
    %v125 = vld [vmem:[#allocation5 + $0x100] sm:$0xff]
    %v126 = vld [vmem:[#allocation5 + $0x108] sm:$0xff]
    %v127 = vld [vmem:[#allocation5 + $0x110] sm:$0xff]
    %v128 = vld [vmem:[#allocation5 + $0x118] sm:$0xff]
    %v129 = vld [vmem:[#allocation5 + $0x120] sm:$0xff]
    %v130 = vld [vmem:[#allocation5 + $0x128] sm:$0xff]
    %v131 = vld [vmem:[#allocation5 + $0x130] sm:$0xff]
    %v132 = vld [vmem:[#allocation5 + $0x138] sm:$0xff]
    %v133 = vld [vmem:[#allocation5 + $0x140] sm:$0xff]
    %v134 = vld [vmem:[#allocation5 + $0x148] sm:$0xff]
    %v135 = vld [vmem:[#allocation5 + $0x150] sm:$0xff]
    %v136 = vld [vmem:[#allocation5 + $0x158] sm:$0xff]
    %v137 = vld [vmem:[#allocation5 + $0x160] sm:$0xff]
    %v138 = vld [vmem:[#allocation5 + $0x168] sm:$0xff]
    %v139 = vld [vmem:[#allocation5 + $0x170] sm:$0xff]
    %v140 = vld [vmem:[#allocation5 + $0x178] sm:$0xff]
    %v141 = vld [vmem:[#allocation5 + $0x180] sm:$0xff]
    %v142 = vld [vmem:[#allocation5 + $0x188] sm:$0xff]
    %v143 = vld [vmem:[#allocation5 + $0x190] sm:$0xff]
    %v144 = vld [vmem:[#allocation5 + $0x198] sm:$0xff]
    %v145 = vld [vmem:[#allocation5 + $0x1a0] sm:$0xff]
    %v146 = vld [vmem:[#allocation5 + $0x1a8] sm:$0xff]
    %v147 = vld [vmem:[#allocation5 + $0x1b0] sm:$0xff]
    %v148 = vld [vmem:[#allocation5 + $0x1b8] sm:$0xff]
    %v149 = vld [vmem:[#allocation5 + $0x1c0] sm:$0xff]
    %v150 = vld [vmem:[#allocation5 + $0x1c8] sm:$0xff]
    %v151 = vld [vmem:[#allocation5 + $0x1d0] sm:$0xff]
    %v152 = vld [vmem:[#allocation5 + $0x1d8] sm:$0xff]
    %v153 = vld [vmem:[#allocation5 + $0x1e0] sm:$0xff]
    %v154 = vld [vmem:[#allocation5 + $0x1e8] sm:$0xff]
    %v155 = vld [vmem:[#allocation5 + $0x1f0] sm:$0xff]
    %v156 = vld [vmem:[#allocation5 + $0x1f8] sm:$0xff]
    %v157 = vld [vmem:[#allocation5 + $0x200] sm:$0xff]
    %v158 = vld [vmem:[#allocation5 + $0x208] sm:$0xff]
    %v159 = vld [vmem:[#allocation5 + $0x210] sm:$0xff]
    %v160 = vld [vmem:[#allocation5 + $0x218] sm:$0xff]
    %v161 = vld [vmem:[#allocation5 + $0x220] sm:$0xff]
    %v162 = vld [vmem:[#allocation5 + $0x228] sm:$0xff]
    %v163 = vld [vmem:[#allocation5 + $0x230] sm:$0xff]
    %v164 = vld [vmem:[#allocation5 + $0x238] sm:$0xff]
    %v165 = vld [vmem:[#allocation5 + $0x240] sm:$0xff]
    %v166 = vld [vmem:[#allocation5 + $0x248] sm:$0xff]
    %v167 = vld [vmem:[#allocation5 + $0x250] sm:$0xff]
    %v168 = vld [vmem:[#allocation5 + $0x258] sm:$0xff]
    %v169 = vld [vmem:[#allocation5 + $0x260] sm:$0xff]
    %v170 = vld [vmem:[#allocation5 + $0x268] sm:$0xff]
    %v171 = vld [vmem:[#allocation5 + $0x270] sm:$0xff]
    %v172 = vld [vmem:[#allocation5 + $0x278] sm:$0xff]
    %v173 = vld [vmem:[#allocation5 + $0x280] sm:$0xff]
    %v174 = vld [vmem:[#allocation5 + $0x288] sm:$0xff]
    %v175 = vld [vmem:[#allocation5 + $0x290] sm:$0xff]
    %v176 = vld [vmem:[#allocation5 + $0x298] sm:$0xff]
    %v177 = vld [vmem:[#allocation5 + $0x2a0] sm:$0xff]
    %v178 = vld [vmem:[#allocation5 + $0x2a8] sm:$0xff]
    %v179 = vld [vmem:[#allocation5 + $0x2b0] sm:$0xff]
    %v180 = vld [vmem:[#allocation5 + $0x2b8] sm:$0xff]
    %v181 = vld [vmem:[#allocation5 + $0x2c0] sm:$0xff]
    %v182 = vld [vmem:[#allocation5 + $0x2c8] sm:$0xff]
    %v183 = vld [vmem:[#allocation5 + $0x2d0] sm:$0xff]
    %v184 = vld [vmem:[#allocation5 + $0x2d8] sm:$0xff]
    %v185 = vld [vmem:[#allocation5 + $0x2e0] sm:$0xff]
    %v186 = vld [vmem:[#allocation5 + $0x2e8] sm:$0xff]
    %v187 = vld [vmem:[#allocation5 + $0x2f0] sm:$0xff]
    %v188 = vld [vmem:[#allocation5 + $0x2f8] sm:$0xff]
    %v189 = vld [vmem:[%s2] sm:$0x3]
    %v191 = vlaneseq
    %v192 = vshrl.u32 %v191, 7
    %v193 = vsub.s32 0, %v192
    %v194 = vrot.slane %v189, %v193
    %v195 = vlaneseq
    %v196 = vshrl.u32 %v195, 7
    %v197 = vsub.s32 1, %v196
    %v198 = vrot.slane %v189, %v197
    %v297 = vunpack.c.l.b16 %v93
    %v298 = vunpack.c.h.b16 %v93
    %v299 = vunpack.c.l.b16 %v94
    %v300 = vunpack.c.h.b16 %v94
    %v301 = vunpack.c.l.b16 %v95
    %v302 = vunpack.c.h.b16 %v95
    %v303 = vunpack.c.l.b16 %v96
    %v304 = vunpack.c.h.b16 %v96
    %v305 = vunpack.c.l.b16 %v97
    %v306 = vunpack.c.h.b16 %v97
    %v307 = vunpack.c.l.b16 %v98
    %v308 = vunpack.c.h.b16 %v98
    %v309 = vunpack.c.l.b16 %v99
    %v310 = vunpack.c.h.b16 %v99
    %v311 = vunpack.c.l.b16 %v100
    %v312 = vunpack.c.h.b16 %v100
    %v313 = vunpack.c.l.b16 %v101
    %v314 = vunpack.c.h.b16 %v101
    %v315 = vunpack.c.l.b16 %v102
    %v316 = vunpack.c.h.b16 %v102
    %v317 = vunpack.c.l.b16 %v103
    %v318 = vunpack.c.h.b16 %v103
    %v319 = vunpack.c.l.b16 %v104
    %v320 = vunpack.c.h.b16 %v104
    %v321 = vunpack.c.l.b16 %v105
    %v322 = vunpack.c.h.b16 %v105
    %v323 = vunpack.c.l.b16 %v106
    %v324 = vunpack.c.h.b16 %v106
    %v325 = vunpack.c.l.b16 %v107
    %v326 = vunpack.c.h.b16 %v107
    %v327 = vunpack.c.l.b16 %v108
    %v328 = vunpack.c.h.b16 %v108
    %v329 = vunpack.c.l.b16 %v109
    %v330 = vunpack.c.h.b16 %v109
    %v331 = vunpack.c.l.b16 %v110
    %v332 = vunpack.c.h.b16 %v110
    %v333 = vunpack.c.l.b16 %v111
    %v334 = vunpack.c.h.b16 %v111
    %v335 = vunpack.c.l.b16 %v112
    %v336 = vunpack.c.h.b16 %v112
    %v337 = vunpack.c.l.b16 %v113
    %v338 = vunpack.c.h.b16 %v113
    %v339 = vunpack.c.l.b16 %v114
    %v340 = vunpack.c.h.b16 %v114
    %v341 = vunpack.c.l.b16 %v115
    %v342 = vunpack.c.h.b16 %v115
    %v343 = vunpack.c.l.b16 %v116
    %v344 = vunpack.c.h.b16 %v116
    %v345 = vunpack.c.l.b16 %v117
    %v346 = vunpack.c.h.b16 %v117
    %v347 = vunpack.c.l.b16 %v118
    %v348 = vunpack.c.h.b16 %v118
    %v349 = vunpack.c.l.b16 %v119
    %v350 = vunpack.c.h.b16 %v119
    %v351 = vunpack.c.l.b16 %v120
    %v352 = vunpack.c.h.b16 %v120
    %v353 = vunpack.c.l.b16 %v121
    %v354 = vunpack.c.h.b16 %v121
    %v355 = vunpack.c.l.b16 %v122
    %v356 = vunpack.c.h.b16 %v122
    %v357 = vunpack.c.l.b16 %v123
    %v358 = vunpack.c.h.b16 %v123
    %v359 = vunpack.c.l.b16 %v124
    %v360 = vunpack.c.h.b16 %v124
    %v361 = vunpack.c.l.b16 %v125
    %v362 = vunpack.c.h.b16 %v125
    %v363 = vunpack.c.l.b16 %v126
    %v364 = vunpack.c.h.b16 %v126
    %v365 = vunpack.c.l.b16 %v127
    %v366 = vunpack.c.h.b16 %v127
    %v367 = vunpack.c.l.b16 %v128
    %v368 = vunpack.c.h.b16 %v128
    %v369 = vunpack.c.l.b16 %v129
    %v370 = vunpack.c.h.b16 %v129
    %v371 = vunpack.c.l.b16 %v130
    %v372 = vunpack.c.h.b16 %v130
    %v373 = vunpack.c.l.b16 %v131
    %v374 = vunpack.c.h.b16 %v131
    %v375 = vunpack.c.l.b16 %v132
    %v376 = vunpack.c.h.b16 %v132
    %v377 = vunpack.c.l.b16 %v133
    %v378 = vunpack.c.h.b16 %v133
    %v379 = vunpack.c.l.b16 %v134
    %v380 = vunpack.c.h.b16 %v134
    %v381 = vunpack.c.l.b16 %v135
    %v382 = vunpack.c.h.b16 %v135
    %v383 = vunpack.c.l.b16 %v136
    %v384 = vunpack.c.h.b16 %v136
    %v385 = vunpack.c.l.b16 %v137
    %v386 = vunpack.c.h.b16 %v137
    %v387 = vunpack.c.l.b16 %v138
    %v388 = vunpack.c.h.b16 %v138
    %v389 = vunpack.c.l.b16 %v139
    %v390 = vunpack.c.h.b16 %v139
    %v391 = vunpack.c.l.b16 %v140
    %v392 = vunpack.c.h.b16 %v140
    %v393 = vunpack.c.l.b16 %v141
    %v394 = vunpack.c.h.b16 %v141
    %v395 = vunpack.c.l.b16 %v142
    %v396 = vunpack.c.h.b16 %v142
    %v397 = vunpack.c.l.b16 %v143
    %v398 = vunpack.c.h.b16 %v143
    %v399 = vunpack.c.l.b16 %v144
    %v400 = vunpack.c.h.b16 %v144
    %v401 = vunpack.c.l.b16 %v145
    %v402 = vunpack.c.h.b16 %v145
    %v403 = vunpack.c.l.b16 %v146
    %v404 = vunpack.c.h.b16 %v146
    %v405 = vunpack.c.l.b16 %v147
    %v406 = vunpack.c.h.b16 %v147
    %v407 = vunpack.c.l.b16 %v148
    %v408 = vunpack.c.h.b16 %v148
    %v409 = vunpack.c.l.b16 %v149
    %v410 = vunpack.c.h.b16 %v149
    %v411 = vunpack.c.l.b16 %v150
    %v412 = vunpack.c.h.b16 %v150
    %v413 = vunpack.c.l.b16 %v151
    %v414 = vunpack.c.h.b16 %v151
    %v415 = vunpack.c.l.b16 %v152
    %v416 = vunpack.c.h.b16 %v152
    %v417 = vunpack.c.l.b16 %v153
    %v418 = vunpack.c.h.b16 %v153
    %v419 = vunpack.c.l.b16 %v154
    %v420 = vunpack.c.h.b16 %v154
    %v421 = vunpack.c.l.b16 %v155
    %v422 = vunpack.c.h.b16 %v155
    %v423 = vunpack.c.l.b16 %v156
    %v424 = vunpack.c.h.b16 %v156
    %v425 = vunpack.c.l.b16 %v157
    %v426 = vunpack.c.h.b16 %v157
    %v427 = vunpack.c.l.b16 %v158
    %v428 = vunpack.c.h.b16 %v158
    %v429 = vunpack.c.l.b16 %v159
    %v430 = vunpack.c.h.b16 %v159
    %v431 = vunpack.c.l.b16 %v160
    %v432 = vunpack.c.h.b16 %v160
    %v433 = vunpack.c.l.b16 %v161
    %v434 = vunpack.c.h.b16 %v161
    %v435 = vunpack.c.l.b16 %v162
    %v436 = vunpack.c.h.b16 %v162
    %v437 = vunpack.c.l.b16 %v163
    %v438 = vunpack.c.h.b16 %v163
    %v439 = vunpack.c.l.b16 %v164
    %v440 = vunpack.c.h.b16 %v164
    %v441 = vunpack.c.l.b16 %v165
    %v442 = vunpack.c.h.b16 %v165
    %v443 = vunpack.c.l.b16 %v166
    %v444 = vunpack.c.h.b16 %v166
    %v445 = vunpack.c.l.b16 %v167
    %v446 = vunpack.c.h.b16 %v167
    %v447 = vunpack.c.l.b16 %v168
    %v448 = vunpack.c.h.b16 %v168
    %v449 = vunpack.c.l.b16 %v169
    %v450 = vunpack.c.h.b16 %v169
    %v451 = vunpack.c.l.b16 %v170
    %v452 = vunpack.c.h.b16 %v170
    %v453 = vunpack.c.l.b16 %v171
    %v454 = vunpack.c.h.b16 %v171
    %v455 = vunpack.c.l.b16 %v172
    %v456 = vunpack.c.h.b16 %v172
    %v457 = vunpack.c.l.b16 %v173
    %v458 = vunpack.c.h.b16 %v173
    %v459 = vunpack.c.l.b16 %v174
    %v460 = vunpack.c.h.b16 %v174
    %v461 = vunpack.c.l.b16 %v175
    %v462 = vunpack.c.h.b16 %v175
    %v463 = vunpack.c.l.b16 %v176
    %v464 = vunpack.c.h.b16 %v176
    %v465 = vunpack.c.l.b16 %v177
    %v466 = vunpack.c.h.b16 %v177
    %v467 = vunpack.c.l.b16 %v178
    %v468 = vunpack.c.h.b16 %v178
    %v469 = vunpack.c.l.b16 %v179
    %v470 = vunpack.c.h.b16 %v179
    %v471 = vunpack.c.l.b16 %v180
    %v472 = vunpack.c.h.b16 %v180
    %v473 = vunpack.c.l.b16 %v181
    %v474 = vunpack.c.h.b16 %v181
    %v475 = vunpack.c.l.b16 %v182
    %v476 = vunpack.c.h.b16 %v182
    %v477 = vunpack.c.l.b16 %v183
    %v478 = vunpack.c.h.b16 %v183
    %v479 = vunpack.c.l.b16 %v184
    %v480 = vunpack.c.h.b16 %v184
    %v481 = vunpack.c.l.b16 %v185
    %v482 = vunpack.c.h.b16 %v185
    %v483 = vunpack.c.l.b16 %v186
    %v484 = vunpack.c.h.b16 %v186
    %v485 = vunpack.c.l.b16 %v187
    %v486 = vunpack.c.h.b16 %v187
    %v487 = vunpack.c.l.b16 %v188
    %v488 = vunpack.c.h.b16 %v188
    %v489 = vpack.c.b16 %v299, %v297
    %v490 = vpack.c.b16 %v300, %v298
    %v491 = vpack.c.b16 %v303, %v301
    %v492 = vpack.c.b16 %v304, %v302
    %v493 = vpack.c.b16 %v307, %v305
    %v494 = vpack.c.b16 %v308, %v306
    %v495 = vpack.c.b16 %v311, %v309
    %v496 = vpack.c.b16 %v312, %v310
    %v497 = vpack.c.b16 %v315, %v313
    %v498 = vpack.c.b16 %v316, %v314
    %v499 = vpack.c.b16 %v319, %v317
    %v500 = vpack.c.b16 %v320, %v318
    %v501 = vpack.c.b16 %v323, %v321
    %v502 = vpack.c.b16 %v324, %v322
    %v503 = vpack.c.b16 %v327, %v325
    %v504 = vpack.c.b16 %v328, %v326
    %v505 = vpack.c.b16 %v331, %v329
    %v506 = vpack.c.b16 %v332, %v330
    %v507 = vpack.c.b16 %v335, %v333
    %v508 = vpack.c.b16 %v336, %v334
    %v509 = vpack.c.b16 %v339, %v337
    %v510 = vpack.c.b16 %v340, %v338
    %v511 = vpack.c.b16 %v343, %v341
    %v512 = vpack.c.b16 %v344, %v342
    %v513 = vpack.c.b16 %v347, %v345
    %v514 = vpack.c.b16 %v348, %v346
    %v515 = vpack.c.b16 %v351, %v349
    %v516 = vpack.c.b16 %v352, %v350
    %v517 = vpack.c.b16 %v355, %v353
    %v518 = vpack.c.b16 %v356, %v354
    %v519 = vpack.c.b16 %v359, %v357
    %v520 = vpack.c.b16 %v360, %v358
    %v521 = vpack.c.b16 %v363, %v361
    %v522 = vpack.c.b16 %v364, %v362
    %v523 = vpack.c.b16 %v367, %v365
    %v524 = vpack.c.b16 %v368, %v366
    %v525 = vpack.c.b16 %v371, %v369
    %v526 = vpack.c.b16 %v372, %v370
    %v527 = vpack.c.b16 %v375, %v373
    %v528 = vpack.c.b16 %v376, %v374
    %v529 = vpack.c.b16 %v379, %v377
    %v530 = vpack.c.b16 %v380, %v378
    %v531 = vpack.c.b16 %v383, %v381
    %v532 = vpack.c.b16 %v384, %v382
    %v533 = vpack.c.b16 %v387, %v385
    %v534 = vpack.c.b16 %v388, %v386
    %v535 = vpack.c.b16 %v391, %v389
    %v536 = vpack.c.b16 %v392, %v390
    %v537 = vpack.c.b16 %v395, %v393
    %v538 = vpack.c.b16 %v396, %v394
    %v539 = vpack.c.b16 %v399, %v397
    %v540 = vpack.c.b16 %v400, %v398
    %v541 = vpack.c.b16 %v403, %v401
    %v542 = vpack.c.b16 %v404, %v402
    %v543 = vpack.c.b16 %v407, %v405
    %v544 = vpack.c.b16 %v408, %v406
    %v545 = vpack.c.b16 %v411, %v409
    %v546 = vpack.c.b16 %v412, %v410
    %v547 = vpack.c.b16 %v415, %v413
    %v548 = vpack.c.b16 %v416, %v414
    %v549 = vpack.c.b16 %v419, %v417
    %v550 = vpack.c.b16 %v420, %v418
    %v551 = vpack.c.b16 %v423, %v421
    %v552 = vpack.c.b16 %v424, %v422
    %v553 = vpack.c.b16 %v427, %v425
    %v554 = vpack.c.b16 %v428, %v426
    %v555 = vpack.c.b16 %v431, %v429
    %v556 = vpack.c.b16 %v432, %v430
    %v557 = vpack.c.b16 %v435, %v433
    %v558 = vpack.c.b16 %v436, %v434
    %v559 = vpack.c.b16 %v439, %v437
    %v560 = vpack.c.b16 %v440, %v438
    %v561 = vpack.c.b16 %v443, %v441
    %v562 = vpack.c.b16 %v444, %v442
    %v563 = vpack.c.b16 %v447, %v445
    %v564 = vpack.c.b16 %v448, %v446
    %v565 = vpack.c.b16 %v451, %v449
    %v566 = vpack.c.b16 %v452, %v450
    %v567 = vpack.c.b16 %v455, %v453
    %v568 = vpack.c.b16 %v456, %v454
    %v569 = vpack.c.b16 %v459, %v457
    %v570 = vpack.c.b16 %v460, %v458
    %v571 = vpack.c.b16 %v463, %v461
    %v572 = vpack.c.b16 %v464, %v462
    %v573 = vpack.c.b16 %v467, %v465
    %v574 = vpack.c.b16 %v468, %v466
    %v575 = vpack.c.b16 %v471, %v469
    %v576 = vpack.c.b16 %v472, %v470
    %v577 = vpack.c.b16 %v475, %v473
    %v578 = vpack.c.b16 %v476, %v474
    %v579 = vpack.c.b16 %v479, %v477
    %v580 = vpack.c.b16 %v480, %v478
    %v581 = vpack.c.b16 %v483, %v481
    %v582 = vpack.c.b16 %v484, %v482
    %v583 = vpack.c.b16 %v487, %v485
    %v584 = vpack.c.b16 %v488, %v486
    %681 = vmatprep.subr.bf16.mxu0 %v490
    %682 = vmatpush1.bf16.msra.mxu0 %v489
    %683 = vmatprep.subr.bf16.mxu0 %v492
    %684 = vmatpush1.bf16.msra.mxu0 %v491
    %685 = vmatprep.subr.bf16.mxu0 %v494
    %686 = vmatpush1.bf16.msra.mxu0 %v493
    %687 = vmatprep.subr.bf16.mxu0 %v496
    %688 = vmatpush1.bf16.msra.mxu0 %v495
    %689 = vmatprep.subr.bf16.mxu0 %v498
    %690 = vmatpush1.bf16.msra.mxu0 %v497
    %691 = vmatprep.subr.bf16.mxu0 %v500
    %692 = vmatpush1.bf16.msra.mxu0 %v499
    %693 = vmatprep.subr.bf16.mxu0 %v502
    %694 = vmatpush1.bf16.msra.mxu0 %v501
    %695 = vmatprep.subr.bf16.mxu0 %v504
    %696 = vmatpush1.bf16.msra.mxu0 %v503
    %697 = vmatprep.subr.bf16.mxu0 %v506
    %698 = vmatpush1.bf16.msra.mxu0 %v505
    %699 = vmatprep.subr.bf16.mxu0 %v508
    %700 = vmatpush1.bf16.msra.mxu0 %v507
    %701 = vmatprep.subr.bf16.mxu0 %v510
    %702 = vmatpush1.bf16.msra.mxu0 %v509
    %703 = vmatprep.subr.bf16.mxu0 %v512
    %704 = vmatpush1.bf16.msra.mxu0 %v511
    %705 = vmatprep.subr.bf16.mxu0 %v514
    %706 = vmatpush1.bf16.msra.mxu0 %v513
    %707 = vmatprep.subr.bf16.mxu0 %v516
    %708 = vmatpush1.bf16.msra.mxu0 %v515
    %709 = vmatprep.subr.bf16.mxu0 %v518
    %710 = vmatpush1.bf16.msra.mxu0 %v517
    %711 = vmatprep.subr.bf16.mxu0 %v520
    %712 = vmatpush1.bf16.msra.mxu0 %v519
    %713 = vmatprep.mubr.bf16.mxu0 %v88
    %714 = vmatmul.mubr.bf16.gmra.mrb[0].mxu0 %v87
    %v715 = vpop.f32.mrb[0].mxu0
    %v716 = vadd.f32 %v194, %v715
    %v717 = vpop.f32.mrb[0].mxu0
    %v718 = vadd.f32 %v198, %v717
    %v719 = vpop.f32.mrb[0].mxu0
    %v720 = vpop.f32.mrb[0].mxu0
    %721 = vdwg.mxu0
    %722 = vmatprep.subr.bf16.mxu0 %v522
    %723 = vmatpush1.bf16.msra.mxu0 %v521
    %724 = vmatprep.subr.bf16.mxu0 %v524
    %725 = vmatpush1.bf16.msra.mxu0 %v523
    %726 = vmatprep.subr.bf16.mxu0 %v526
    %727 = vmatpush1.bf16.msra.mxu0 %v525
    %728 = vmatprep.subr.bf16.mxu0 %v528
    %729 = vmatpush1.bf16.msra.mxu0 %v527
    %730 = vmatprep.subr.bf16.mxu0 %v530
    %731 = vmatpush1.bf16.msra.mxu0 %v529
    %732 = vmatprep.subr.bf16.mxu0 %v532
    %733 = vmatpush1.bf16.msra.mxu0 %v531
    %734 = vmatprep.subr.bf16.mxu0 %v534
    %735 = vmatpush1.bf16.msra.mxu0 %v533
    %736 = vmatprep.subr.bf16.mxu0 %v536
    %737 = vmatpush1.bf16.msra.mxu0 %v535
    %738 = vmatprep.subr.bf16.mxu0 %v538
    %739 = vmatpush1.bf16.msra.mxu0 %v537
    %740 = vmatprep.subr.bf16.mxu0 %v540
    %741 = vmatpush1.bf16.msra.mxu0 %v539
    %742 = vmatprep.subr.bf16.mxu0 %v542
    %743 = vmatpush1.bf16.msra.mxu0 %v541
    %744 = vmatprep.subr.bf16.mxu0 %v544
    %745 = vmatpush1.bf16.msra.mxu0 %v543
    %746 = vmatprep.subr.bf16.mxu0 %v546
    %747 = vmatpush1.bf16.msra.mxu0 %v545
    %748 = vmatprep.subr.bf16.mxu0 %v548
    %749 = vmatpush1.bf16.msra.mxu0 %v547
    %750 = vmatprep.subr.bf16.mxu0 %v550
    %751 = vmatpush1.bf16.msra.mxu0 %v549
    %752 = vmatprep.subr.bf16.mxu0 %v552
    %753 = vmatpush1.bf16.msra.mxu0 %v551
    %754 = vmatprep.mubr.bf16.mxu0 %v90
    %755 = vmatmul.mubr.bf16.gmra.mrb[0].mxu0 %v89
    %v756 = vpop.f32.mrb[0].mxu0
    %v757 = vadd.f32 %v716, %v756
    %v758 = vpop.f32.mrb[0].mxu0
    %v759 = vadd.f32 %v718, %v758
    %v760 = vpop.f32.mrb[0].mxu0
    %v761 = vpop.f32.mrb[0].mxu0
    %762 = vdwg.mxu0
    %763 = vmatprep.subr.bf16.mxu0 %v554
    %764 = vmatpush1.bf16.msra.mxu0 %v553
    %765 = vmatprep.subr.bf16.mxu0 %v556
    %766 = vmatpush1.bf16.msra.mxu0 %v555
    %767 = vmatprep.subr.bf16.mxu0 %v558
    %768 = vmatpush1.bf16.msra.mxu0 %v557
    %769 = vmatprep.subr.bf16.mxu0 %v560
    %770 = vmatpush1.bf16.msra.mxu0 %v559
    %771 = vmatprep.subr.bf16.mxu0 %v562
    %772 = vmatpush1.bf16.msra.mxu0 %v561
    %773 = vmatprep.subr.bf16.mxu0 %v564
    %774 = vmatpush1.bf16.msra.mxu0 %v563
    %775 = vmatprep.subr.bf16.mxu0 %v566
    %776 = vmatpush1.bf16.msra.mxu0 %v565
    %777 = vmatprep.subr.bf16.mxu0 %v568
    %778 = vmatpush1.bf16.msra.mxu0 %v567
    %779 = vmatprep.subr.bf16.mxu0 %v570
    %780 = vmatpush1.bf16.msra.mxu0 %v569
    %781 = vmatprep.subr.bf16.mxu0 %v572
    %782 = vmatpush1.bf16.msra.mxu0 %v571
    %783 = vmatprep.subr.bf16.mxu0 %v574
    %784 = vmatpush1.bf16.msra.mxu0 %v573
    %785 = vmatprep.subr.bf16.mxu0 %v576
    %786 = vmatpush1.bf16.msra.mxu0 %v575
    %787 = vmatprep.subr.bf16.mxu0 %v578
    %788 = vmatpush1.bf16.msra.mxu0 %v577
    %789 = vmatprep.subr.bf16.mxu0 %v580
    %790 = vmatpush1.bf16.msra.mxu0 %v579
    %791 = vmatprep.subr.bf16.mxu0 %v582
    %792 = vmatpush1.bf16.msra.mxu0 %v581
    %793 = vmatprep.subr.bf16.mxu0 %v584
    %794 = vmatpush1.bf16.msra.mxu0 %v583
    %795 = vmatprep.mubr.bf16.mxu0 %v92
    %796 = vmatmul.mubr.bf16.gmra.mrb[0].mxu0 %v91
    %v797 = vpop.f32.mrb[0].mxu0
    %v798 = vadd.f32 %v757, %v797
    %v799 = vpop.f32.mrb[0].mxu0
    %v800 = vadd.f32 %v759, %v799
    %v801 = vpop.f32.mrb[0].mxu0
    %v802 = vpop.f32.mrb[0].mxu0
    %803 = vdwg.mxu0
    %v804 = vmul.f32 %v798, 0.5
    %v805 = vmul.f32 %v800, 0.5
    %v806 = vmul.f32 %v798, 0.70710677
    %v807 = vmul.f32 %v800, 0.70710677
    %v808 = verf.f32.pop %v806
    %v809 = verf.f32.pop %v807
    %v810 = vadd.f32 %v808, 1.0
    %v811 = vadd.f32 %v809, 1.0
    %v812 = vmul.f32 %v804, %v810
    %v813 = vmul.f32 %v805, %v811
    %v814 = vpack.c.bf16 %v812, %v812
    %v815 = vpack.c.bf16 %v813, %v813
    %v816 = vld [vmem:[#allocation7] sm:$0xf]
    %v817 = vld [vmem:[#allocation7 + $0x4] sm:$0xf]
    %v818 = vld [vmem:[#allocation7 + $0x8] sm:$0xf]
    %v819 = vld [vmem:[#allocation7 + $0xc] sm:$0xf]
    %v820 = vld [vmem:[#allocation7 + $0x10] sm:$0xf]
    %v821 = vld [vmem:[#allocation7 + $0x14] sm:$0xf]
    %v822 = vld [vmem:[#allocation7 + $0x18] sm:$0xf]
    %v823 = vld [vmem:[#allocation7 + $0x1c] sm:$0xf]
    %v824 = vld [vmem:[#allocation7 + $0x20] sm:$0xf]
    %v825 = vld [vmem:[#allocation7 + $0x24] sm:$0xf]
    %v826 = vld [vmem:[#allocation7 + $0x28] sm:$0xf]
    %v827 = vld [vmem:[#allocation7 + $0x2c] sm:$0xf]
    %v828 = vld [vmem:[#allocation7 + $0x30] sm:$0xf]
    %v829 = vld [vmem:[#allocation7 + $0x34] sm:$0xf]
    %v830 = vld [vmem:[#allocation7 + $0x38] sm:$0xf]
    %v831 = vld [vmem:[#allocation7 + $0x3c] sm:$0xf]
    %v832 = vld [vmem:[#allocation7 + $0x40] sm:$0xf]
    %v833 = vld [vmem:[#allocation7 + $0x44] sm:$0xf]
    %v834 = vld [vmem:[#allocation7 + $0x48] sm:$0xf]
    %v835 = vld [vmem:[#allocation7 + $0x4c] sm:$0xf]
    %v836 = vld [vmem:[#allocation7 + $0x50] sm:$0xf]
    %v837 = vld [vmem:[#allocation7 + $0x54] sm:$0xf]
    %v838 = vld [vmem:[#allocation7 + $0x58] sm:$0xf]
    %v839 = vld [vmem:[#allocation7 + $0x5c] sm:$0xf]
    %v840 = vld [vmem:[#allocation7 + $0x60] sm:$0xf]
    %v841 = vld [vmem:[#allocation7 + $0x64] sm:$0xf]
    %v842 = vld [vmem:[#allocation7 + $0x68] sm:$0xf]
    %v843 = vld [vmem:[#allocation7 + $0x6c] sm:$0xf]
    %v844 = vld [vmem:[#allocation7 + $0x70] sm:$0xf]
    %v845 = vld [vmem:[#allocation7 + $0x74] sm:$0xf]
    %v846 = vld [vmem:[#allocation7 + $0x78] sm:$0xf]
    %v847 = vld [vmem:[#allocation7 + $0x7c] sm:$0xf]
    %v848 = vld [vmem:[%s4] sm:$0x1]
    %v850 = vlaneseq
    %v851 = vshrl.u32 %v850, 7
    %v852 = vsub.s32 0, %v851
    %v853 = vrot.slane %v848, %v852
    %v887 = vunpack.c.l.b16 %v816
    %v888 = vunpack.c.l.b16 %v817
    %v889 = vunpack.c.l.b16 %v818
    %v890 = vunpack.c.l.b16 %v819
    %v891 = vunpack.c.l.b16 %v820
    %v892 = vunpack.c.l.b16 %v821
    %v893 = vunpack.c.l.b16 %v822
    %v894 = vunpack.c.l.b16 %v823
    %v895 = vunpack.c.l.b16 %v824
    %v896 = vunpack.c.l.b16 %v825
    %v897 = vunpack.c.l.b16 %v826
    %v898 = vunpack.c.l.b16 %v827
    %v899 = vunpack.c.l.b16 %v828
    %v900 = vunpack.c.l.b16 %v829
    %v901 = vunpack.c.l.b16 %v830
    %v902 = vunpack.c.l.b16 %v831
    %v903 = vunpack.c.l.b16 %v832
    %v904 = vunpack.c.l.b16 %v833
    %v905 = vunpack.c.l.b16 %v834
    %v906 = vunpack.c.l.b16 %v835
    %v907 = vunpack.c.l.b16 %v836
    %v908 = vunpack.c.l.b16 %v837
    %v909 = vunpack.c.l.b16 %v838
    %v910 = vunpack.c.l.b16 %v839
    %v911 = vunpack.c.l.b16 %v840
    %v912 = vunpack.c.l.b16 %v841
    %v913 = vunpack.c.l.b16 %v842
    %v914 = vunpack.c.l.b16 %v843
    %v915 = vunpack.c.l.b16 %v844
    %v916 = vunpack.c.l.b16 %v845
    %v917 = vunpack.c.l.b16 %v846
    %v918 = vunpack.c.l.b16 %v847
    %v919 = vpack.c.b16 %v888, %v887
    %v920 = vpack.c.b16 %v890, %v889
    %v921 = vpack.c.b16 %v892, %v891
    %v922 = vpack.c.b16 %v894, %v893
    %v923 = vpack.c.b16 %v896, %v895
    %v924 = vpack.c.b16 %v898, %v897
    %v925 = vpack.c.b16 %v900, %v899
    %v926 = vpack.c.b16 %v902, %v901
    %v927 = vpack.c.b16 %v904, %v903
    %v928 = vpack.c.b16 %v906, %v905
    %v929 = vpack.c.b16 %v908, %v907
    %v930 = vpack.c.b16 %v910, %v909
    %v931 = vpack.c.b16 %v912, %v911
    %v932 = vpack.c.b16 %v914, %v913
    %v933 = vpack.c.b16 %v916, %v915
    %v934 = vpack.c.b16 %v918, %v917
    %951 = vmatprep.subr.bf16.mxu0 0
    %952 = vmatpush1.bf16.msra.mxu0 %v919
    %953 = vmatprep.subr.bf16.mxu0 0
    %954 = vmatpush1.bf16.msra.mxu0 %v920
    %955 = vmatprep.subr.bf16.mxu0 0
    %956 = vmatpush1.bf16.msra.mxu0 %v921
    %957 = vmatprep.subr.bf16.mxu0 0
    %958 = vmatpush1.bf16.msra.mxu0 %v922
    %959 = vmatprep.subr.bf16.mxu0 0
    %960 = vmatpush1.bf16.msra.mxu0 %v923
    %961 = vmatprep.subr.bf16.mxu0 0
    %962 = vmatpush1.bf16.msra.mxu0 %v924
    %963 = vmatprep.subr.bf16.mxu0 0
    %964 = vmatpush1.bf16.msra.mxu0 %v925
    %965 = vmatprep.subr.bf16.mxu0 0
    %966 = vmatpush1.bf16.msra.mxu0 %v926
    %967 = vmatprep.subr.bf16.mxu0 0
    %968 = vmatpush1.bf16.msra.mxu0 %v927
    %969 = vmatprep.subr.bf16.mxu0 0
    %970 = vmatpush1.bf16.msra.mxu0 %v928
    %971 = vmatprep.subr.bf16.mxu0 0
    %972 = vmatpush1.bf16.msra.mxu0 %v929
    %973 = vmatprep.subr.bf16.mxu0 0
    %974 = vmatpush1.bf16.msra.mxu0 %v930
    %975 = vmatprep.subr.bf16.mxu0 0
    %976 = vmatpush1.bf16.msra.mxu0 %v931
    %977 = vmatprep.subr.bf16.mxu0 0
    %978 = vmatpush1.bf16.msra.mxu0 %v932
    %979 = vmatprep.subr.bf16.mxu0 0
    %980 = vmatpush1.bf16.msra.mxu0 %v933
    %981 = vmatprep.subr.bf16.mxu0 0
    %982 = vmatpush1.bf16.msra.mxu0 %v934
    %983 = vmatprep.mubr.bf16.mxu0 %v815
    %984 = vmatmul.mubr.bf16.gmra.mrb[0].mxu0 %v814
    %v985 = vpop.f32.mrb[0].mxu0
    %v986 = vadd.f32 %v853, %v985
    %v987 = vpop.f32.mrb[0].mxu0
    %v988 = vpop.f32.mrb[0].mxu0
    %v989 = vpop.f32.mrb[0].mxu0
    %990 = vdwg.mxu0
    %v991 = vmul.f32 %v986, 0.5
    %v992 = vmul.f32 %v986, 0.70710677
    %v993 = verf.f32.pop %v992
    %v994 = vadd.f32 %v993, 1.0
    %v995 = vmul.f32 %v991, %v994
    %v996 = vld [vmem:[#allocation8] sm:$0xff]
    %v997 = vld [vmem:[#allocation8 + $0x8] sm:$0xff]
    %v998 = vld [vmem:[#allocation8 + $0x10] sm:$0xff]
    %v999 = vld [vmem:[#allocation8 + $0x18] sm:$0xff]
    %v1000 = vld [vmem:[#allocation8 + $0x20] sm:$0xff]
    %v1001 = vld [vmem:[#allocation8 + $0x28] sm:$0xff]
    %v1002 = vld [vmem:[#allocation8 + $0x30] sm:$0xff]
    %v1003 = vld [vmem:[#allocation8 + $0x38] sm:$0xff]
    %v1004 = vld [vmem:[#allocation8 + $0x40] sm:$0xff]
    %v1005 = vld [vmem:[#allocation8 + $0x48] sm:$0xff]
    %v1006 = vld [vmem:[#allocation8 + $0x50] sm:$0xff]
    %v1007 = vld [vmem:[#allocation8 + $0x58] sm:$0xff]
    %v1008 = vld [vmem:[#allocation8 + $0x60] sm:$0xff]
    %v1009 = vld [vmem:[#allocation8 + $0x68] sm:$0xff]
    %v1010 = vld [vmem:[#allocation8 + $0x70] sm:$0xff]
    %v1011 = vld [vmem:[#allocation8 + $0x78] sm:$0xff]
    %v1012 = vld [vmem:[%s6] sm:$0x1]
    %v1014 = vlaneseq
    %v1015 = vshrl.u32 %v1014, 7
    %v1016 = vsub.s32 0, %v1015
    %v1017 = vrot.slane %v1012, %v1016
    %1019 = vmatprep.subr.mxu0 0.0
    %1020 = vmatpush1.msra.mxu0 %v996
    %1021 = vmatprep.subr.mxu0 0.0
    %1022 = vmatpush1.msra.mxu0 %v997
    %1023 = vmatprep.subr.mxu0 0.0
    %1024 = vmatpush1.msra.mxu0 %v998
    %1025 = vmatprep.subr.mxu0 0.0
    %1026 = vmatpush1.msra.mxu0 %v999
    %1027 = vmatprep.subr.mxu0 0.0
    %1028 = vmatpush1.msra.mxu0 %v1000
    %1029 = vmatprep.subr.mxu0 0.0
    %1030 = vmatpush1.msra.mxu0 %v1001
    %1031 = vmatprep.subr.mxu0 0.0
    %1032 = vmatpush1.msra.mxu0 %v1002
    %1033 = vmatprep.subr.mxu0 0.0
    %1034 = vmatpush1.msra.mxu0 %v1003
    %1035 = vmatprep.subr.mxu0 0.0
    %1036 = vmatpush1.msra.mxu0 %v1004
    %1037 = vmatprep.subr.mxu0 0.0
    %1038 = vmatpush1.msra.mxu0 %v1005
    %1039 = vmatprep.subr.mxu0 0.0
    %1040 = vmatpush1.msra.mxu0 %v1006
    %1041 = vmatprep.subr.mxu0 0.0
    %1042 = vmatpush1.msra.mxu0 %v1007
    %1043 = vmatprep.subr.mxu0 0.0
    %1044 = vmatpush1.msra.mxu0 %v1008
    %1045 = vmatprep.subr.mxu0 0.0
    %1046 = vmatpush1.msra.mxu0 %v1009
    %1047 = vmatprep.subr.mxu0 0.0
    %1048 = vmatpush1.msra.mxu0 %v1010
    %1049 = vmatprep.subr.mxu0 0.0
    %1050 = vmatpush1.msra.mxu0 %v1011
    %1051 = vmatprep.subr.mxu0 0.0
    %1052 = vmatpush1.msra.mxu0 0.0
    %1053 = vmatprep.subr.mxu0 0.0
    %1054 = vmatpush1.msra.mxu0 0.0
    %1055 = vmatprep.subr.mxu0 0.0
    %1056 = vmatpush1.msra.mxu0 0.0
    %1057 = vmatprep.subr.mxu0 0.0
    %1058 = vmatpush1.msra.mxu0 0.0
    %1059 = vmatprep.subr.mxu0 0.0
    %1060 = vmatpush1.msra.mxu0 0.0
    %1061 = vmatprep.subr.mxu0 0.0
    %1062 = vmatpush1.msra.mxu0 0.0
    %1063 = vmatprep.subr.mxu0 0.0
    %1064 = vmatpush1.msra.mxu0 0.0
    %1065 = vmatprep.subr.mxu0 0.0
    %1066 = vmatpush1.msra.mxu0 0.0
    %1067 = vmatprep.subr.mxu0 0.0
    %1068 = vmatpush1.msra.mxu0 0.0
    %1069 = vmatprep.subr.mxu0 0.0
    %1070 = vmatpush1.msra.mxu0 0.0
    %1071 = vmatprep.subr.mxu0 0.0
    %1072 = vmatpush1.msra.mxu0 0.0
    %1073 = vmatprep.subr.mxu0 0.0
    %1074 = vmatpush1.msra.mxu0 0.0
    %1075 = vmatprep.subr.mxu0 0.0
    %1076 = vmatpush1.msra.mxu0 0.0
    %1077 = vmatprep.subr.mxu0 0.0
    %1078 = vmatpush1.msra.mxu0 0.0
    %1079 = vmatprep.subr.mxu0 0.0
    %1080 = vmatpush1.msra.mxu0 0.0
    %1081 = vmatprep.subr.mxu0 0.0
    %1082 = vmatpush1.msra.mxu0 0.0
    %1083 = vmatprep.mubr.f32.mxu0 0.0
    %1084 = vmatmul.mubr.f32.gmra.mrb[0].mxu0 %v995
    %v1085 = vpop.f32.mrb[0].mxu0
    %v1086 = vadd.f32 %v1017, %v1085
    %v1087 = vpop.f32.mrb[0].mxu0
    %1088 = vdwg.mxu0
    %1089 = vst [vmem:[#allocation10] sm:$0xff] %v1086
    // Predicated region
    $region46: #{tpu_custom_call.1} parent=1 // pred_check
      _
    $region47: #{tpu_custom_call.1} parent=1 // pred_check_branch
      %1091 = sbr.rel (0) target = $region49
    $region48: #{tpu_custom_call.1} parent=1 // pred_region
      %s1093 = ssub.s32 128, 128
      %1094 = vsyncadd [#allocation4], %s1093
      %s1096 = sshll.u32 [#allocation10], 4
      %s1097 = int_to_ptr.vmem [resolvable:$true] %s1096
      %1099 = dma.vmem_to_hbm [thread:$0]  %s1097, 128, %s7, [#allocation4]
    $region49: #{tpu_custom_call.1} parent=1 // pred_fallthru
      _
    // Predicated region
    $region50: #{tpu_custom_call.1} parent=1 // pred_check
      _
    $region51: #{tpu_custom_call.1} parent=1 // pred_check_branch
      %1101 = sbr.rel (0) target = $region53
    $region52: #{tpu_custom_call.1} parent=1 // pred_region
      %1102 = dma.done [#allocation4], 128
    $region53: #{tpu_custom_call.1} parent=1 // pred_fallthru
      _
    %1103 = vsyncpa [#allocation3], 1
    %1104 = vsyncpa [#allocation6], 1
    %1105 = vsyncpa [#allocation9], 1
    %1106 = vsyncpa [#allocation4], 1

</llo_original>
